<compile_context>
chip_gen: v7x
topology: tpu7x:2x2x1
jax: 0.10.0
libtpu: 0.0.40
codegen_flags: <defaults>
</compile_context>

<pallas_src>
import functools

import jax
import jax.numpy as jnp
from jax import lax
from jax.experimental import pallas as pl
from jax.experimental.pallas import tpu as pltpu


# ---------------------------------------------------------------------------
# Kernels
# ---------------------------------------------------------------------------
def sird_rhs_kernel(params_ref, y_ref, out_ref):
    """RHS of the SIRD ODE.

    params_ref: SMEM f32[3] = [beta/N, gamma/N, delta/N]
    y_ref:      VMEM f32[2, block_b, block_f]  (only S and I are fetched)
    out_ref:    VMEM f32[4, block_b, block_f]
    """
    beta_over_n = params_ref[0]
    gamma_over_n = params_ref[1]
    delta_over_n = params_ref[2]

    S = y_ref[0]
    I = y_ref[1]

    t = (beta_over_n * S) * I            # beta*S*I / N, computed once
    dRdt = gamma_over_n * I
    dDdt = delta_over_n * I
    dIdt = t - dRdt - dDdt               # == (beta*S*I - gamma*I - delta*I)/N

    # Full (8,128)-aligned, lane-dense unmasked stores.
    out_ref[0] = -t
    out_ref[1] = dIdt
    out_ref[2] = dRdt
    out_ref[3] = dDdt


def sird_euler_nsteps_kernel(params_ref, y_ref, out_ref, *, n_steps):
    """Fused n_steps of explicit Euler, state kept in the output VMEM block.

    params_ref: SMEM f32[4] = [beta/N, gamma/N, delta/N, dt]
    y_ref/out_ref: VMEM f32[4, block_b, block_f]
    """
    beta_over_n = params_ref[0]
    gamma_over_n = params_ref[1]
    delta_over_n = params_ref[2]
    dt = params_ref[3]

    out_ref[...] = y_ref[...]            # one HBM read; all stepping stays in VMEM

    def body(_, carry):
        S = out_ref[0]
        I = out_ref[1]
        t = (beta_over_n * S) * I
        dRdt = gamma_over_n * I
        dDdt = delta_over_n * I
        dIdt = t - dRdt - dDdt
        out_ref[0] = S - dt * t
        out_ref[1] = I + dt * dIdt
        out_ref[2] = out_ref[2] + dt * dRdt
        out_ref[3] = out_ref[3] + dt * dDdt
        return carry

    lax.fori_loop(0, n_steps, body, 0)   # one HBM write after the loop


# ---------------------------------------------------------------------------
# Host-side helpers
# ---------------------------------------------------------------------------
def make_sird_params(beta, gamma, delta, population):
    """Scaled coefficients, materialized on device ONCE (outside any time loop)."""
    inv_n = 1.0 / float(population)
    return jnp.array([beta * inv_n, gamma * inv_n, delta * inv_n], dtype=jnp.float32)


def make_sird_step_params(beta, gamma, delta, population, dt):
    inv_n = 1.0 / float(population)
    return jnp.array(
        [beta * inv_n, gamma * inv_n, delta * inv_n, dt], dtype=jnp.float32
    )


def _pick_tiles(b, f, *, ncomp=4, itemsize=4, target_block_bytes=1 << 20):
    """(block_b, block_f) from a VMEM byte budget; pl.cdiv handles ragged edges.

    - Lane dim: full F if small, else a 128-multiple capped at 2048 lanes.
    - Sublane dim: full B if B <= 8, else a multiple of 8 sized so one
      ncomp-compartment block is ~target_block_bytes, capped so the grid has
      >= 2 blocks whenever B allows it (v7x megacore sharding).
    """
    block_f = f if f <= 2048 else 2048
    if b <= 8:
        return b, block_f
    rows = max(8, (target_block_bytes // (ncomp * block_f * itemsize)) // 8 * 8)
    rows = min(rows, max(8, ((b // 2) // 8) * 8))   # keep >= 2 grid blocks
    rows = min(rows, ((b + 7) // 8) * 8)            # never exceed padded B
    return rows, block_f


# ---------------------------------------------------------------------------
# pallas_call wrappers
# ---------------------------------------------------------------------------
@jax.jit
def sird_forward(y, params):
    """dy/dt for the SIRD system (module forward). y: f32[4,B,F]; params: f32[3]."""
    _, B, F = y.shape
    block_b, block_f = _pick_tiles(B, F)
    grid = (pl.cdiv(B, block_b), pl.cdiv(F, block_f))
    return pl.pallas_call(
        sird_rhs_kernel,
        out_shape=jax.ShapeDtypeStruct(y.shape, y.dtype),
        grid_spec=pltpu.PrefetchScalarGridSpec(
            num_scalar_prefetch=1,
            grid=grid,
            # Only S/I (first-axis block index 0, block extent 2) are DMA'd in.
            in_specs=[
                pl.BlockSpec((2, block_b, block_f), lambda i, j, p: (0, i, j))
            ],
            out_specs=pl.BlockSpec((4, block_b, block_f), lambda i, j, p: (0, i, j)),
        ),
        compiler_params=pltpu.CompilerParams(
            dimension_semantics=("parallel", "parallel"),
        ),
    )(params, y)


@functools.partial(jax.jit, static_argnums=2, donate_argnums=0)
def sird_euler_trajectory(y, step_params, n_steps):
    """y_{t + n*dt} via n_steps fused explicit-Euler steps, all in VMEM.

    y is DONATED (in-place HBM update via input_output_aliases); do not reuse it.
    """
    _, B, F = y.shape
    block_b, block_f = _pick_tiles(B, F)
    grid = (pl.cdiv(B, block_b), pl.cdiv(F, block_f))
    kernel = functools.partial(sird_euler_nsteps_kernel, n_steps=n_steps)
    return pl.pallas_call(
        kernel,
        out_shape=jax.ShapeDtypeStruct(y.shape, y.dtype),
        grid_spec=pltpu.PrefetchScalarGridSpec(
            num_scalar_prefetch=1,
            grid=grid,
            in_specs=[
                pl.BlockSpec((4, block_b, block_f), lambda i, j, p: (0, i, j))
            ],
            out_specs=pl.BlockSpec((4, block_b, block_f), lambda i, j, p: (0, i, j)),
        ),
        input_output_aliases={1: 0},  # operand 1 (y) aliases output 0 (donated above)
        compiler_params=pltpu.CompilerParams(
            dimension_semantics=("parallel", "parallel"),
        ),
    )(step_params, y)


# ---------------------------------------------------------------------------
# Pure-JAX references
# ---------------------------------------------------------------------------
def sird_reference(y, beta, gamma, delta, population):
    S, I = y[0], y[1]
    N = population
    dSdt = -beta * S * I / N
    dIdt = (beta * S * I - gamma * I - delta * I) / N
    dRdt = gamma * I / N
    dDdt = delta * I / N
    return jnp.stack([dSdt, dIdt, dRdt, dDdt])


def sird_euler_reference(y, beta, gamma, delta, population, dt, n_steps):
    def step(carry, _):
        return carry + dt * sird_reference(carry, beta, gamma, delta, population), None

    y_final, _ = lax.scan(step, y, None, length=n_steps)
    return y_final


# ---------------------------------------------------------------------------
# Demo / self-test
# ---------------------------------------------------------------------------
if __name__ == "__main__":
    key = jax.random.PRNGKey(0)

    # SIRD has no learned weights; beta/gamma/delta come from setup().
    population = 1_000_000.0
    beta, gamma, delta = 0.35, 0.10, 0.02
    dt, n_steps = 0.05, 16

    # Small state: 4 compartments of (16, 128) positive values. B=16 gives a
    # 2-block "parallel" grid (exercises megacore sharding) with (8,128) tiles.
    B, F = 16, 128
    y = jax.random.uniform(
        key, (4, B, F), dtype=jnp.float32, minval=0.0, maxval=population / 4.0
    )

    # Coefficient vectors built once (no per-step host->device transfers).
    params = make_sird_params(beta, gamma, delta, population)
    step_params = make_sird_step_params(beta, gamma, delta, population, dt)

    # Pure-JAX references (computed before any donation).
    ref_rhs = sird_reference(y, beta, gamma, delta, population)
    ref_traj = sird_euler_reference(y, beta, gamma, delta, population, dt, n_steps)

    # 1) Module forward == ODE right-hand side.
    out = jax.block_until_ready(sird_forward(y, params))
    assert out.shape == y.shape and out.dtype == y.dtype
    assert jnp.allclose(out, ref_rhs, rtol=1e-5, atol=1e-3), "RHS mismatch vs reference"

    # 2) Fused multi-step Euler trajectory (y_run is donated; do not reuse it).
    y_run = y + 0.0
    y_T = jax.block_until_ready(sird_euler_trajectory(y_run, step_params, n_steps))
    assert y_T.shape == y.shape and y_T.dtype == y.dtype
    assert jnp.allclose(y_T, ref_traj, rtol=1e-4, atol=1e-2), "Euler trajectory mismatch"

    print("KERNEL_OK")
</pallas_src>

<mosaic_0001>
module attributes {stable_mosaic.version = 11 : i64} {
  func.func @sird_rhs_kernel(%arg0: i32, %arg1: i32, %arg2: memref<3xf32, #tpu.memory_space<smem>>, %arg3: memref<2x8x128xf32, #tpu.memory_space<vmem>>, %arg4: memref<4x8x128xf32, #tpu.memory_space<vmem>>) attributes {dimension_semantics = [#tpu.dimension_semantics<parallel>, #tpu.dimension_semantics<parallel>], iteration_bounds = array<i64: 2, 1>, scalar_prefetch = 1 : i64, scratch_operands = 0 : i64, tpu.core_type = #tpu.core_type<tc>, window_params = [{transform_indices = @transform_0, window_bounds = array<i64: 2, 8, 128>}, {transform_indices = @transform_1, window_bounds = array<i64: 4, 8, 128>}]} {
    %c0 = arith.constant 0 : index
    %0 = memref.load %arg2[%c0] : memref<3xf32, #tpu.memory_space<smem>>
    %c1 = arith.constant 1 : index
    %1 = memref.load %arg2[%c1] : memref<3xf32, #tpu.memory_space<smem>>
    %c2 = arith.constant 2 : index
    %2 = memref.load %arg2[%c2] : memref<3xf32, #tpu.memory_space<smem>>
    %c0_0 = arith.constant 0 : index
    %c0_1 = arith.constant 0 : index
    %c0_2 = arith.constant 0 : index
    %3 = vector.load %arg3[%c0_0, %c0_1, %c0_2] : memref<2x8x128xf32, #tpu.memory_space<vmem>>, vector<1x8x128xf32>
    %4 = vector.shape_cast %3 : vector<1x8x128xf32> to vector<8x128xf32>
    %c1_3 = arith.constant 1 : index
    %c0_4 = arith.constant 0 : index
    %c0_5 = arith.constant 0 : index
    %5 = vector.load %arg3[%c1_3, %c0_4, %c0_5] : memref<2x8x128xf32, #tpu.memory_space<vmem>>, vector<1x8x128xf32>
    %6 = vector.shape_cast %5 : vector<1x8x128xf32> to vector<8x128xf32>
    %7 = vector.broadcast %0 : f32 to vector<8x128xf32>
    %8 = arith.mulf %7, %4 : vector<8x128xf32>
    %9 = arith.mulf %8, %6 : vector<8x128xf32>
    %10 = vector.broadcast %1 : f32 to vector<8x128xf32>
    %11 = arith.mulf %10, %6 : vector<8x128xf32>
    %12 = vector.broadcast %2 : f32 to vector<8x128xf32>
    %13 = arith.mulf %12, %6 : vector<8x128xf32>
    %14 = arith.subf %9, %11 : vector<8x128xf32>
    %15 = arith.subf %14, %13 : vector<8x128xf32>
    %cst = arith.constant 0.000000e+00 : f32
    %16 = vector.broadcast %cst : f32 to vector<8x128xf32>
    %17 = arith.subf %16, %9 : vector<8x128xf32>
    %c0_6 = arith.constant 0 : index
    %c0_7 = arith.constant 0 : index
    %c0_8 = arith.constant 0 : index
    %18 = vector.load %arg4[%c0_6, %c0_7, %c0_8] : memref<4x8x128xf32, #tpu.memory_space<vmem>>, vector<1x8x128xf32>
    %19 = vector.shape_cast %18 : vector<1x8x128xf32> to vector<8x128xf32>
    %20 = vector.shape_cast %17 : vector<8x128xf32> to vector<1x8x128xf32>
    tpu.vector_store %arg4[%c0_6, %c0_7, %c0_8], %20 {strides = array<i32>} : memref<4x8x128xf32, #tpu.memory_space<vmem>>, vector<1x8x128xf32>,
    %c1_9 = arith.constant 1 : index
    %c0_10 = arith.constant 0 : index
    %c0_11 = arith.constant 0 : index
    %21 = vector.load %arg4[%c1_9, %c0_10, %c0_11] : memref<4x8x128xf32, #tpu.memory_space<vmem>>, vector<1x8x128xf32>
    %22 = vector.shape_cast %21 : vector<1x8x128xf32> to vector<8x128xf32>
    %23 = vector.shape_cast %15 : vector<8x128xf32> to vector<1x8x128xf32>
    tpu.vector_store %arg4[%c1_9, %c0_10, %c0_11], %23 {strides = array<i32>} : memref<4x8x128xf32, #tpu.memory_space<vmem>>, vector<1x8x128xf32>,
    %c2_12 = arith.constant 2 : index
    %c0_13 = arith.constant 0 : index
    %c0_14 = arith.constant 0 : index
    %24 = vector.load %arg4[%c2_12, %c0_13, %c0_14] : memref<4x8x128xf32, #tpu.memory_space<vmem>>, vector<1x8x128xf32>
    %25 = vector.shape_cast %24 : vector<1x8x128xf32> to vector<8x128xf32>
    %26 = vector.shape_cast %11 : vector<8x128xf32> to vector<1x8x128xf32>
    tpu.vector_store %arg4[%c2_12, %c0_13, %c0_14], %26 {strides = array<i32>} : memref<4x8x128xf32, #tpu.memory_space<vmem>>, vector<1x8x128xf32>,
    %c3 = arith.constant 3 : index
    %c0_15 = arith.constant 0 : index
    %c0_16 = arith.constant 0 : index
    %27 = vector.load %arg4[%c3, %c0_15, %c0_16] : memref<4x8x128xf32, #tpu.memory_space<vmem>>, vector<1x8x128xf32>
    %28 = vector.shape_cast %27 : vector<1x8x128xf32> to vector<8x128xf32>
    %29 = vector.shape_cast %13 : vector<8x128xf32> to vector<1x8x128xf32>
    tpu.vector_store %arg4[%c3, %c0_15, %c0_16], %29 {strides = array<i32>} : memref<4x8x128xf32, #tpu.memory_space<vmem>>, vector<1x8x128xf32>,
    return
  }
  func.func @transform_0(%arg0: i32, %arg1: i32, %arg2: memref<3xf32, #tpu.memory_space<smem>>) -> (i32, i32, i32) {
    %c0_i32 = arith.constant 0 : i32
    %c0_i32_0 = arith.constant 0 : i32
    return %c0_i32, %arg0, %arg1 : i32, i32, i32
  }
  func.func @transform_1(%arg0: i32, %arg1: i32, %arg2: memref<3xf32, #tpu.memory_space<smem>>) -> (i32, i32, i32) {
    %c0_i32 = arith.constant 0 : i32
    %c0_i32_0 = arith.constant 0 : i32
    return %c0_i32, %arg0, %arg1 : i32, i32, i32
  }
}

</mosaic_0001>

<llo_original>
// kernel: sird_forward.1
$region0: #{sird_forward.1}
  #allocation0 [shape = 'u32[]', space=smem, size = 0x4, offset = 0x4, fixed_abs, tag = 'smem constant byte address 0x4 - core index']
  #allocation1 [shape = 'u32[144,128]{1,0:T(1,128)}', space=vmem, size = 0x12000, scoped, tag = 'internal scratch']
  #allocation2 [shape = 's32[1]{0}', space=sflag, size = 0x4, scoped, tag = 'scoped memory for sird_forward.1']
  #allocation3 [shape = 'u8[512]{0}', space=smem, size = 0x200, scoped, tag = 'prefetched SMEM operand 0']
  %s0 = inlined_call_operand.vmem [shape: f32[3], index: 0, kind: input, shape index: {}]
  %s1 = inlined_call_operand.hbm [shape: f32[4,16,128], index: 1, kind: input, shape index: {}]
  %s2 = inlined_call_operand.hbm [shape: f32[4,16,128], index: 2, kind: output, shape index: {}]
  %s3 = sld [smem:[#allocation0]]
  $region41: #{sird_forward.1} parent=0
    _
  %s5 = ssub.s32 1, %s3
  %s6 = scalar_select 0, %s5, %s3
  %s7 = sshll.u32 %s0, 4
  %s8 = int_to_ptr.vmem [resolvable:$true] %s7
  %10 = dma.vmem_to_smem %s8, 16, [#allocation3], [#allocation2]
  %11 = dma.done [#allocation2], 16
  %12 = sfence
  $region1: #{sird_forward.1} parent=0
    #allocation4 [shape = 'u8[16384]{0}', space=vmem, size = 0x4000, scoped, tag = 'input window, operand 1']
    #allocation5 [shape = 's32[2]{0}', space=sflag, size = 0x8, scoped, tag = 'scoped memory for sird_forward.1']
    #allocation6 [shape = 's32[2]{0}', space=sflag, size = 0x8, scoped, tag = 'scoped memory for sird_forward.1']
    #allocation7 [shape = 'u8[32768]{0}', space=vmem, size = 0x8000, scoped, tag = 'output window, operand 0']
    %13 = vsyncpa [#allocation5], 0
    %s14 = scalar_lea.sflag [#allocation5], 1
    %15 = vsyncpa %s14, 0
    %16 = vsyncpa [#allocation6], 0
    %s17 = scalar_lea.sflag [#allocation6], 1
    %18 = vsyncpa %s17, 0
    loop: start=0, step=1, limit=4
    $region2: #{sird_forward.1} parent=1 // loop_pre_header
      _
    $region3: #{sird_forward.1} parent=1 // loop_header
      %s20 = sphi 0, %s24
      %p21 = scmp.ge.s32.totalorder %s20, 4
      %s27 = sphi 0, %s39
      %s28 = sphi 0, %s35
      %s29 = sphi 0, %s27
      %s30 = sphi 0, %s28
      %s31 = sphi 0, %s29
      %s32 = sphi 0, %s30
      %s44 = sphi 0, %s46
      %s47 = sphi 0, %s44
      %s48 = sphi 0, %s47
      %s64 = sphi 0, %s48
      %s72 = sphi 0, %s74
      %s75 = sphi 0, %s72
      %s76 = sphi 0, %s75
      %s92 = sphi 0, %s76
    $region4: #{sird_forward.1} parent=1 // loop_header_branch
      %23 = sbr.rel (%p21) target = $region8
    $region5: #{sird_forward.1} parent=1 // loop_body
      %s25 = ssub.s32 %s20, 1
      %s26 = ssub.s32 %s20, 2
      %s33 = sadd.s32 1, %s28
      %p34 = scmp.ge.s32.totalorder %s33, 1
      %s35 = scalar_select %p34, 0, %s33
      %s36 = sadd.s32 1, %s27
      %s37 = scalar_select %p34, %s36, %s27
      %p38 = scmp.ge.s32.totalorder %s37, 2
      %s39 = scalar_select %p38, 0, %s37
      %s40 = ssub.s32 %s27, %s39
      %s41 = ssub.s32 %s28, %s35
      %s42 = sor.u32 %s40, %s41
      %p43 = scmp.eq.s32.totalorder %s42, 0
      %s45 = sadd.s32 %s44, 1
      %s46 = scalar_select %p43, %s44, %s45
      %p49 = pneg %p43
      %p50 = scmp.eq.s32.totalorder %s20, 1
      %p51 = por %p49, %p50
      %p52 = scmp.ne.s32.totalorder %s44, %s47
      %p53 = scmp.eq.s32.totalorder %s20, 0
      %p54 = por %p52, %p53
      %p55 = scmp.ne.s32.totalorder %s44, %s47
      %p56 = scmp.eq.s32.totalorder %s25, 1
      %p57 = por %p55, %p56
      %p58 = scmp.ne.s32.totalorder %s47, %s48
      %p59 = scmp.eq.s32.totalorder %s25, 0
      %p60 = por %p58, %p59
      %p61 = scmp.ne.s32.totalorder %s47, %s48
      %p62 = scmp.eq.s32.totalorder %s26, 1
      %p63 = por %p61, %p62
      %p65 = scmp.ne.s32.totalorder %s48, %s64
      %p66 = scmp.eq.s32.totalorder %s26, 0
      %p67 = por %p65, %p66
      %s68 = ssub.s32 %s27, %s39
      %s69 = ssub.s32 %s28, %s35
      %s70 = sor.u32 %s68, %s69
      %p71 = scmp.eq.s32.totalorder %s70, 0
      %s73 = sadd.s32 %s72, 1
      %s74 = scalar_select %p71, %s72, %s73
      %p77 = pneg %p71
      %p78 = scmp.eq.s32.totalorder %s20, 1
      %p79 = por %p77, %p78
      %p80 = scmp.ne.s32.totalorder %s72, %s75
      %p81 = scmp.eq.s32.totalorder %s20, 0
      %p82 = por %p80, %p81
      %p83 = scmp.ne.s32.totalorder %s72, %s75
      %p84 = scmp.eq.s32.totalorder %s25, 1
      %p85 = por %p83, %p84
      %p86 = scmp.ne.s32.totalorder %s75, %s76
      %p87 = scmp.eq.s32.totalorder %s25, 0
      %p88 = por %p86, %p87
      %p89 = scmp.ne.s32.totalorder %s75, %s76
      %p90 = scmp.eq.s32.totalorder %s26, 1
      %p91 = por %p89, %p90
      %p93 = scmp.ne.s32.totalorder %s76, %s92
      %p94 = scmp.eq.s32.totalorder %s26, 0
      %p95 = por %p93, %p94
      %p96 = scmp.le.s32.totalorder 1, %s20
      %p97 = scmp.lt.s32.totalorder %s20, 3
      %p98 = pnand %p96, %p97
      %p99 = pneg %p98
      // Predicated region
      $region9: #{sird_forward.1} parent=5 // pred_check
        _
      $region10: #{sird_forward.1} parent=5 // pred_check_branch
        %101 = sbr.rel (%p98) target = $region12
      $region11: #{sird_forward.1} parent=5 // pred_region
        %s102 = ssub.s32 %s20, 1
      $region12: #{sird_forward.1} parent=5 // pred_fallthru
        _
      %p103 = scmp.lt.s32.totalorder %s20, 2
      // Predicated region
      $region13: #{sird_forward.1} parent=5 // pred_check
        %p104 = pneg %p103
      $region14: #{sird_forward.1} parent=5 // pred_check_branch
        %106 = sbr.rel (%p104) target = $region16
      $region15: #{sird_forward.1} parent=5 // pred_region
        // Predicated region
        $region17: #{sird_forward.1} parent=15 // pred_check
          %p107 = pneg %p54
        $region18: #{sird_forward.1} parent=15 // pred_check_branch
          %109 = sbr.rel (%p107) target = $region20
        $region19: #{sird_forward.1} parent=15 // pred_region
          %s110 = sand.u32 %s44, 1
          %s111 = scalar_lea.sflag [#allocation5], %s110
          %s112 = sand.u32 %s44, 1
          %s113 = smul.addr %s112, 16
          %s114 = scalar_lea.vmem [#allocation4], %s113
          %s116 = ssub.s32 256, 256
          %117 = vsyncadd %s111, %s116
          %s118 = sadd.s32 %s28, %s27
          %s119 = smul.addr %s118, 128
          %s120 = scalar_lea.hbm %s1, %s119
          %s121 = sshll.u32 %s114, 4
          %s122 = int_to_ptr.vmem [resolvable:$true] %s121
          %127 = dma.hbm_to_vmem [thread:$0]  %s120, 256, %s122, %s111, 256, 128, 8
        $region20: #{sird_forward.1} parent=15 // pred_fallthru
          _
      $region16: #{sird_forward.1} parent=5 // pred_fallthru
        _
      %p128 = scmp.le.s32.totalorder 1, %s20
      %p129 = scmp.lt.s32.totalorder %s20, 3
      %p130 = pnand %p128, %p129
      %p131 = pneg %p130
      // Predicated region
      $region21: #{sird_forward.1} parent=5 // pred_check
        _
      $region22: #{sird_forward.1} parent=5 // pred_check_branch
        %133 = sbr.rel (%p130) target = $region24
      $region23: #{sird_forward.1} parent=5 // pred_region
        %s134 = ssub.s32 %s20, 1
        %s135 = sand.u32 %s47, 1
        %s136 = scalar_lea.sflag [#allocation5], %s135
        %s137 = sand.u32 %s47, 1
        %s138 = smul.addr %s137, 16
        %s139 = scalar_lea.vmem [#allocation4], %s138
        // Predicated region
        $region25: #{sird_forward.1} parent=23 // pred_check
          %p140 = pneg %p60
        $region26: #{sird_forward.1} parent=23 // pred_check_branch
          %142 = sbr.rel (%p140) target = $region28
        $region27: #{sird_forward.1} parent=23 // pred_region
          %143 = dma.done %s136, 256
        $region28: #{sird_forward.1} parent=23 // pred_fallthru
          _
        %s144 = sand.u32 %s47, 1
        %s145 = scalar_lea.sflag [#allocation5], %s144
        %s146 = sand.u32 %s47, 1
        %s147 = smul.addr %s146, 16
        %s148 = scalar_lea.vmem [#allocation4], %s147
        %p149 = pneg %p60
        %p150 = pneg %p57
        %p151 = pneg %p88
        %p152 = pneg %p85
        %s153 = sand.u32 %s75, 1
        %s154 = scalar_lea.sflag [#allocation6], %s153
        %s155 = sand.u32 %s75, 1
        %s156 = smul.addr %s155, 32
        %s157 = scalar_lea.vmem [#allocation7], %s156
        %s158 = sld [smem:[#allocation3]]
        %s159 = sld [smem:[#allocation3 + $0x1]]
        %s160 = sld [smem:[#allocation3 + $0x2]]
        %v161 = vld [vmem:[%s139] sm:$0xff]
        %s162 = scalar_lea.vmem %s139, 8 [#allocation4]
        %v163 = vld [vmem:[%s162] sm:$0xff]
        %v164 = vstv %s158
        %v165 = vmul.f32 %v164, %v161
        %v166 = vmul.f32 %v165, %v163
        %v167 = vstv %s159
        %v168 = vmul.f32 %v167, %v163
        %v169 = vstv %s160
        %v170 = vmul.f32 %v169, %v163
        %v171 = vsub.f32 %v166, %v168
        %v172 = vsub.f32 %v171, %v170
        %v173 = vsub.f32 0.0, %v166
        %174 = vst [vmem:[%s157] sm:$0xff] %v173
        %s175 = scalar_lea.vmem %s157, 8 [#allocation7]
        %176 = vst [vmem:[%s175] sm:$0xff] %v172
        %s177 = scalar_lea.vmem %s157, 16 [#allocation7]
        %178 = vst [vmem:[%s177] sm:$0xff] %v168
        %s179 = scalar_lea.vmem %s157, 24 [#allocation7]
        %180 = vst [vmem:[%s179] sm:$0xff] %v170
        %s181 = sand.u32 %s75, 1
        %s182 = scalar_lea.sflag [#allocation6], %s181
        %s183 = sand.u32 %s75, 1
        %s184 = smul.addr %s183, 32
        %s185 = scalar_lea.vmem [#allocation7], %s184
        // Predicated region
        $region29: #{sird_forward.1} parent=23 // pred_check
          %p186 = pneg %p85
        $region30: #{sird_forward.1} parent=23 // pred_check_branch
          %188 = sbr.rel (%p186) target = $region32
        $region31: #{sird_forward.1} parent=23 // pred_region
          %s190 = ssub.s32 512, 512
          %191 = vsyncadd %s182, %s190
          %s192 = sadd.s32 %s30, %s29
          %s193 = smul.addr %s192, 128
          %s194 = scalar_lea.hbm %s2, %s193
          %s195 = sshll.u32 %s185, 4
          %s196 = int_to_ptr.vmem [resolvable:$true] %s195
          %201 = dma.vmem_to_hbm [thread:$0]  %s196, 512, %s194, %s182, 128, 256, 8
        $region32: #{sird_forward.1} parent=23 // pred_fallthru
          _
      $region24: #{sird_forward.1} parent=5 // pred_fallthru
        _
      %p202 = scmp.le.s32.totalorder 2, %s20
      // Predicated region
      $region33: #{sird_forward.1} parent=5 // pred_check
        %p203 = pneg %p202
      $region34: #{sird_forward.1} parent=5 // pred_check_branch
        %205 = sbr.rel (%p203) target = $region36
      $region35: #{sird_forward.1} parent=5 // pred_region
        %s206 = ssub.s32 %s20, 2
        // Predicated region
        $region37: #{sird_forward.1} parent=35 // pred_check
          %p207 = pneg %p91
        $region38: #{sird_forward.1} parent=35 // pred_check_branch
          %209 = sbr.rel (%p207) target = $region40
        $region39: #{sird_forward.1} parent=35 // pred_region
          %s210 = sand.u32 %s76, 1
          %s211 = scalar_lea.sflag [#allocation6], %s210
          %s212 = sand.u32 %s76, 1
          %s213 = smul.addr %s212, 32
          %s214 = scalar_lea.vmem [#allocation7], %s213
          %215 = dma.done %s211, 512
        $region40: #{sird_forward.1} parent=35 // pred_fallthru
          _
      $region36: #{sird_forward.1} parent=5 // pred_fallthru
        _
    $region6: #{sird_forward.1} parent=1 // loop_footer
      %s24 = sadd.s32 1, %s20
    $region7: #{sird_forward.1} parent=1 // loop_footer_branch
      %19 = sbr.rel target = $region3
    $region8: #{sird_forward.1} parent=1 // loop_exit
      _
    %216 = vsyncpa [#allocation5], 1
    %s217 = scalar_lea.sflag [#allocation5], 1
    %218 = vsyncpa %s217, 1
    %219 = vsyncpa [#allocation6], 1
    %s220 = scalar_lea.sflag [#allocation6], 1
    %221 = vsyncpa %s220, 1

</llo_original>
